<compile_context>
chip_gen: v5e
topology: v5e:2x2
jax: 0.10.0
libtpu: 0.0.40
codegen_flags: <defaults>
</compile_context>

<pallas_src>
import functools
import math

import jax
import jax.numpy as jnp
from jax.experimental import pallas as pl
from jax.experimental.pallas import tpu as pltpu


# ----------------------------- in-kernel helpers --------------------------------

def _gelu(x):
    # TODO(synk): HF BERT uses exact erf GELU; tanh approximation used here.
    return 0.5 * x * (1.0 + jnp.tanh(0.7978845608028654 * (x + 0.044715 * x * x * x)))


def _layernorm(x, g, b, eps):
    mu = jnp.mean(x, axis=-1, keepdims=True)
    var = jnp.mean(jnp.square(x - mu), axis=-1, keepdims=True)
    return (x - mu) * jax.lax.rsqrt(var + eps) * g + b


def _mhsa_proj(x, wqkv, bqkv, wo, bias_row, *, nh, dh, scale):
    """Multi-head self-attention + output projection on a VMEM-resident (T, H) tile.

    Heads are unrolled statically; the head merge is expressed as a sum of per-head
    output projections (ctx_h @ wo[h*dh:(h+1)*dh, :]) so no concat/transpose is needed.
    Returns (T, H) (output-projection bias NOT added).
    """
    H = nh * dh
    qkv = jnp.dot(x, wqkv, preferred_element_type=jnp.float32) + bqkv
    q = qkv[:, 0:H] * scale            # fold 1/sqrt(dh) into q once
    k = qkv[:, H:2 * H]
    v = qkv[:, 2 * H:3 * H]
    out = None
    for h in range(nh):
        sl = slice(h * dh, (h + 1) * dh)
        s = jax.lax.dot_general(q[:, sl], k[:, sl], (((1,), (1,)), ((), ())),
                                preferred_element_type=jnp.float32)
        if bias_row is not None:
            s = s + bias_row                               # additive mask bias (1, Tk)
        m = jnp.max(s, axis=-1, keepdims=True)
        p = jnp.exp(s - m)
        inv_l = pl.reciprocal(jnp.sum(p, axis=-1, keepdims=True), approx=True)
        ctx_h = jnp.dot(p, v[:, sl], preferred_element_type=jnp.float32) * inv_l
        proj_h = jnp.dot(ctx_h, wo[sl, :], preferred_element_type=jnp.float32)
        out = proj_h if out is None else out + proj_h
    return out


# ----------------------------- Pallas kernels -----------------------------------

def _embed_ln_kernel(x_ref, g_ref, b_ref, o_ref, *, eps):
    # LayerNorm over last axis, no residual.  x:(M,H)  g,b:(1,H)
    x = x_ref[...].astype(jnp.float32)
    o_ref[...] = _layernorm(x, g_ref[...], b_ref[...], eps).astype(o_ref.dtype)


def _encoder_layer_kernel(x_ref, bias_ref, wqkv_ref, bqkv_ref, wo_ref, bo_ref,
                          ln1_g_ref, ln1_b_ref, wi_ref, bi_ref, wo2_ref, bo2_ref,
                          ln2_g_ref, ln2_b_ref, o_ref, *, nh, dh, eps):
    # One full BERT encoder layer for one batch element's (S, H) tile.
    x = x_ref[...].astype(jnp.float32)                      # (S, H)
    scale = 1.0 / math.sqrt(dh)
    attn = _mhsa_proj(x, wqkv_ref[...], bqkv_ref[...], wo_ref[...],
                      bias_ref[0], nh=nh, dh=dh, scale=scale) + bo_ref[...]
    x1 = _layernorm(attn + x, ln1_g_ref[...], ln1_b_ref[...], eps)
    inter = _gelu(jnp.dot(x1, wi_ref[...], preferred_element_type=jnp.float32)
                  + bi_ref[...])
    ffn = jnp.dot(inter, wo2_ref[...], preferred_element_type=jnp.float32) + bo2_ref[...]
    x2 = _layernorm(ffn + x1, ln2_g_ref[...], ln2_b_ref[...], eps)
    o_ref[...] = x2.astype(o_ref.dtype)


def _head_kernel(hidden_ref, mask_ref, wqkv_ref, bqkv_ref, wo_ref, bo_ref,
                 lw_ref, lb_ref, o_ref, *, nh, dh, criteria):
    # Pooling + nn.MultiheadAttention over the pooled (B, H) "sequence" + Linear head.
    hidden = hidden_ref[...].astype(jnp.float32)            # (B, S, H)
    mask = mask_ref[...].astype(jnp.float32)                # (B, S)
    if criteria == "CLS":
        pooled = hidden[:, 0, :]
    elif criteria == "avg":
        # Matches the PyTorch spec: sum over ALL positions / mask sum.
        pooled = jnp.sum(hidden, axis=1) / jnp.sum(mask, axis=-1, keepdims=True)
    elif criteria == "max":
        # Matches the PyTorch spec: max over (hidden * mask).
        pooled = jnp.max(hidden * mask[:, :, None], axis=1)
    else:
        raise ValueError(criteria)

    scale = 1.0 / math.sqrt(dh)
    mha = _mhsa_proj(pooled, wqkv_ref[...], bqkv_ref[...], wo_ref[...],
                     None, nh=nh, dh=dh, scale=scale) + bo_ref[...]
    y = jnp.dot(mha, lw_ref[...], preferred_element_type=jnp.float32) + lb_ref[...]
    o_ref[...] = y.astype(o_ref.dtype)


# ----------------------------- kernel wrappers -----------------------------------

def embed_layernorm(x, gamma, beta, eps=1e-12):
    M, H = x.shape
    return pl.pallas_call(
        functools.partial(_embed_ln_kernel, eps=eps),
        out_shape=jax.ShapeDtypeStruct((M, H), x.dtype),
    )(x, gamma, beta)


def _rep_spec(shape):
    # Whole-array block, same block index for every grid step (weights stay resident).
    return pl.BlockSpec(shape, lambda *_: (0,) * len(shape))


def encoder_layer(x, mask_bias, lp, *, B, S, nh, dh, eps=1e-12):
    H = nh * dh
    inter = lp["wi"].shape[1]
    kernel = functools.partial(_encoder_layer_kernel, nh=nh, dh=dh, eps=eps)
    return pl.pallas_call(
        kernel,
        out_shape=jax.ShapeDtypeStruct((B * S, H), x.dtype),
        grid=(B,),
        in_specs=[
            pl.BlockSpec((S, H), lambda b: (b, 0)),          # x: one batch's tokens
            pl.BlockSpec((1, 1, S), lambda b: (b, 0, 0)),    # mask bias for this batch
            _rep_spec((H, 3 * H)), _rep_spec((1, 3 * H)),    # packed QKV
            _rep_spec((H, H)), _rep_spec((1, H)),            # attn out proj
            _rep_spec((1, H)), _rep_spec((1, H)),            # LN1
            _rep_spec((H, inter)), _rep_spec((1, inter)),    # FFN in
            _rep_spec((inter, H)), _rep_spec((1, H)),        # FFN out
            _rep_spec((1, H)), _rep_spec((1, H)),            # LN2
        ],
        out_specs=pl.BlockSpec((S, H), lambda b: (b, 0)),
        compiler_params=pltpu.CompilerParams(dimension_semantics=("parallel",)),
    )(x, mask_bias, lp["wqkv"], lp["bqkv"], lp["wo"], lp["bo"],
      lp["ln1_g"], lp["ln1_b"], lp["wi"], lp["bi"], lp["wo2"], lp["bo2"],
      lp["ln2_g"], lp["ln2_b"])


def pooled_head(hidden3, maskf, params, criteria):
    B, S, H = hidden3.shape
    nh2 = params["cfg"]["mha_heads"]
    out_n = params["cfg"]["output_n"]
    kernel = functools.partial(_head_kernel, nh=nh2, dh=H // nh2, criteria=criteria)
    return pl.pallas_call(
        kernel,
        out_shape=jax.ShapeDtypeStruct((B, out_n), jnp.float32),
    )(hidden3, maskf, params["mha_wqkv"], params["mha_bqkv"],
      params["mha_wo"], params["mha_bo"], params["lin_w"], params["lin_b"])


# ------------------------------- parameters ---------------------------------------

def init_params(key, *, vocab=100, hidden=32, layers=2, heads=4, inter=64,
                max_pos=16, type_vocab=2, mha_heads=8, output_n=2):
    def nrm(k, shape, std=0.02):
        return std * jax.random.normal(k, shape, jnp.float32)

    zeros = lambda *s: jnp.zeros(s, jnp.float32)
    ones = lambda *s: jnp.ones(s, jnp.float32)

    keys = jax.random.split(key, 4 + layers)
    p = {"cfg": dict(hidden=hidden, heads=heads, mha_heads=mha_heads, output_n=output_n)}
    p["word_emb"] = nrm(keys[0], (vocab, hidden))
    p["pos_emb"] = nrm(keys[1], (max_pos, hidden))
    p["type_emb"] = nrm(keys[2], (type_vocab, hidden))
    p["emb_ln_g"], p["emb_ln_b"] = ones(1, hidden), zeros(1, hidden)

    p["layers"] = []
    for li in range(layers):
        lk = jax.random.split(keys[3 + li], 6)
        wq, wk, wv = (nrm(lk[0], (hidden, hidden)), nrm(lk[1], (hidden, hidden)),
                      nrm(lk[2], (hidden, hidden)))
        p["layers"].append({
            "wqkv": jnp.concatenate([wq, wk, wv], axis=1),   # packed (H, 3H)
            "bqkv": zeros(1, 3 * hidden),
            "wo": nrm(lk[3], (hidden, hidden)), "bo": zeros(1, hidden),
            "ln1_g": ones(1, hidden), "ln1_b": zeros(1, hidden),
            "wi": nrm(lk[4], (hidden, inter)), "bi": zeros(1, inter),
            "wo2": nrm(lk[5], (inter, hidden)), "bo2": zeros(1, hidden),
            "ln2_g": ones(1, hidden), "ln2_b": zeros(1, hidden),
        })

    mk = jax.random.split(keys[3 + layers], 5)
    wq, wk, wv = (nrm(mk[0], (hidden, hidden)), nrm(mk[1], (hidden, hidden)),
                  nrm(mk[2], (hidden, hidden)))
    p["mha_wqkv"] = jnp.concatenate([wq, wk, wv], axis=1)    # packed (H, 3H)
    p["mha_bqkv"] = zeros(1, 3 * hidden)
    p["mha_wo"] = nrm(mk[3], (hidden, hidden)); p["mha_bo"] = zeros(1, hidden)
    p["lin_w"] = nrm(mk[4], (hidden, output_n)); p["lin_b"] = zeros(1, output_n)
    return p


# ------------------------------- forward pass --------------------------------------

def bert_attention_forward(params, input_ids, attention_mask, criteria="avg"):
    cfg = params["cfg"]
    B, S = input_ids.shape
    H, nh = cfg["hidden"], cfg["heads"]
    dh = H // nh
    maskf = attention_mask.astype(jnp.float32)

    # --- BERT embeddings (gathers are glue; LayerNorm is a Pallas kernel) ---
    emb = (params["word_emb"][input_ids]
           + params["pos_emb"][:S][None, :, :]
           + params["type_emb"][0][None, None, :])
    x = embed_layernorm(emb.reshape(B * S, H).astype(jnp.float32),
                        params["emb_ln_g"], params["emb_ln_b"])

    # additive attention-mask bias, one row per batch (no per-head replication)
    mask_bias = ((1.0 - maskf) * -10000.0).reshape(B, 1, S)

    # --- encoder: one fused pallas_call per layer, grid over batch ("parallel") ---
    for lp in params["layers"]:
        x = encoder_layer(x, mask_bias, lp, B=B, S=S, nh=nh, dh=dh)

    hidden3 = x.reshape(B, S, H)       # last_hidden_state

    # --- fused pooling + nn.MultiheadAttention (unbatched seq L=B) + Linear head ---
    return pooled_head(hidden3, maskf, params, criteria)


# ----------------------------------- main ------------------------------------------

if __name__ == "__main__":
    key = jax.random.PRNGKey(0)
    pkey, ikey = jax.random.split(key)
    params = init_params(pkey)

    B, S = 2, 8
    input_ids = jax.random.randint(ikey, (B, S), 0, 100, dtype=jnp.int32)
    attention_mask = jnp.array([[1, 1, 1, 1, 1, 1, 1, 1],
                                [1, 1, 1, 1, 1, 1, 0, 0]], dtype=jnp.int32)

    y = bert_attention_forward(params, input_ids, attention_mask, criteria="avg")
    y = jax.block_until_ready(y)
    assert y.shape == (B, params["cfg"]["output_n"])
    assert bool(jnp.all(jnp.isfinite(y)))
    print("KERNEL_OK")
</pallas_src>

<mosaic_0001>
module attributes {stable_mosaic.version = 11 : i64} {
  func.func @_embed_ln_kernel(%arg0: memref<16x32xf32, #tpu.memory_space<vmem>>, %arg1: memref<1x32xf32, #tpu.memory_space<vmem>>, %arg2: memref<1x32xf32, #tpu.memory_space<vmem>>, %arg3: memref<16x32xf32, #tpu.memory_space<vmem>>) attributes {dimension_semantics = [], scalar_prefetch = 0 : i64, scratch_operands = 0 : i64, tpu.core_type = #tpu.core_type<tc>} {
    %c0 = arith.constant 0 : index
    %c0_0 = arith.constant 0 : index
    %0 = vector.load %arg0[%c0, %c0_0] : memref<16x32xf32, #tpu.memory_space<vmem>>, vector<16x32xf32>
    %c0_1 = arith.constant 0 : index
    %c0_2 = arith.constant 0 : index
    %1 = vector.load %arg1[%c0_1, %c0_2] : memref<1x32xf32, #tpu.memory_space<vmem>>, vector<1x32xf32>
    %c0_3 = arith.constant 0 : index
    %c0_4 = arith.constant 0 : index
    %2 = vector.load %arg2[%c0_3, %c0_4] : memref<1x32xf32, #tpu.memory_space<vmem>>, vector<1x32xf32>
    %cst = arith.constant dense<0.000000e+00> : vector<16xf32>
    %3 = vector.multi_reduction <add>, %0, %cst [1] : vector<16x32xf32> to vector<16xf32>
    %4 = vector.shape_cast %3 : vector<16xf32> to vector<16x1xf32>
    %cst_5 = arith.constant 3.200000e+01 : f32
    %5 = vector.broadcast %cst_5 : f32 to vector<16x1xf32>
    %6 = arith.divf %4, %5 : vector<16x1xf32>
    %7 = vector.broadcast %6 : vector<16x1xf32> to vector<16x32xf32>
    %8 = arith.subf %0, %7 : vector<16x32xf32>
    %9 = arith.mulf %8, %8 : vector<16x32xf32>
    %cst_6 = arith.constant dense<0.000000e+00> : vector<16xf32>
    %10 = vector.multi_reduction <add>, %9, %cst_6 [1] : vector<16x32xf32> to vector<16xf32>
    %11 = vector.shape_cast %10 : vector<16xf32> to vector<16x1xf32>
    %cst_7 = arith.constant 3.200000e+01 : f32
    %12 = vector.broadcast %cst_7 : f32 to vector<16x1xf32>
    %13 = arith.divf %11, %12 : vector<16x1xf32>
    %14 = vector.broadcast %6 : vector<16x1xf32> to vector<16x32xf32>
    %15 = arith.subf %0, %14 : vector<16x32xf32>
    %cst_8 = arith.constant 9.99999996E-13 : f32
    %16 = vector.broadcast %cst_8 : f32 to vector<16x1xf32>
    %17 = arith.addf %13, %16 : vector<16x1xf32>
    %18 = math.rsqrt %17 : vector<16x1xf32>
    %19 = vector.broadcast %18 : vector<16x1xf32> to vector<16x32xf32>
    %20 = arith.mulf %15, %19 : vector<16x32xf32>
    %21 = vector.broadcast %1 : vector<1x32xf32> to vector<16x32xf32>
    %22 = arith.mulf %20, %21 : vector<16x32xf32>
    %23 = vector.broadcast %2 : vector<1x32xf32> to vector<16x32xf32>
    %24 = arith.addf %22, %23 : vector<16x32xf32>
    %c0_9 = arith.constant 0 : index
    %c0_10 = arith.constant 0 : index
    %25 = vector.load %arg3[%c0_9, %c0_10] : memref<16x32xf32, #tpu.memory_space<vmem>>, vector<16x32xf32>
    tpu.vector_store %arg3[%c0_9, %c0_10], %24 {strides = array<i32>} : memref<16x32xf32, #tpu.memory_space<vmem>>, vector<16x32xf32>,
    return
  }
}

</mosaic_0001>

<llo_original>
// kernel: tpu_custom_call.1
$region0: #{tpu_custom_call.1}
  #allocation0 [shape = 'u32[]', space=smem, size = 0x4, offset = 0x4, fixed_abs, tag = 'smem constant byte address 0x4 - core index']
  #allocation1 [shape = 'u32[72,128]{1,0:T(1,128)}', space=vmem, size = 0x9000, scoped, tag = 'internal scratch']
  %s0 = inlined_call_operand.hbm [shape: f32[16,32], index: 0, kind: input, shape index: {}]
  %s1 = inlined_call_operand.hbm [shape: f32[1,32], index: 1, kind: input, shape index: {}]
  %s2 = inlined_call_operand.vmem [shape: f32[1,32], index: 2, kind: input, shape index: {}]
  %s3 = inlined_call_operand.hbm [shape: f32[16,32], index: 3, kind: output, shape index: {}]
  %s4 = sld [smem:[#allocation0]]
  $region30: #{tpu_custom_call.1} parent=0
    _
  %s6 = ssub.s32 1, %s4
  %s7 = scalar_select 0, %s6, %s4
  $region1: #{tpu_custom_call.1} parent=0
    #allocation2 [shape = 'u8[8192]{0}', space=vmem, size = 0x2000, scoped, tag = 'input window, operand 0, single buffered']
    #allocation3 [shape = 's32[1]{0}', space=sflag, size = 0x4, scoped, tag = 'scoped memory for tpu_custom_call.1']
    #allocation4 [shape = 's32[1]{0}', space=sflag, size = 0x4, scoped, tag = 'scoped memory for tpu_custom_call.1']
    #allocation5 [shape = 'u8[512]{0}', space=vmem, size = 0x400, scoped, tag = 'input window, operand 1, single buffered']
    #allocation6 [shape = 's32[1]{0}', space=sflag, size = 0x4, scoped, tag = 'scoped memory for tpu_custom_call.1']
    #allocation7 [shape = 'u8[8192]{0}', space=vmem, size = 0x2000, scoped, tag = 'output window, operand 0, single buffered']
    %8 = vsyncpa [#allocation3], 0
    %9 = vsyncpa [#allocation6], 0
    %10 = vsyncpa [#allocation4], 0
    // Predicated region
    $region2: #{tpu_custom_call.1} parent=1 // pred_check
      _
    $region3: #{tpu_custom_call.1} parent=1 // pred_check_branch
      %12 = sbr.rel (0) target = $region5
    $region4: #{tpu_custom_call.1} parent=1 // pred_region
      %14 = vsyncadd [#allocation3], 0
      %s15 = sshll.u32 %s0, 4
      %s16 = int_to_ptr.hbm [resolvable:$true] %s15
      %s17 = sshll.u32 [#allocation2], 4
      %s18 = int_to_ptr.vmem [resolvable:$true] %s17
      %23 = dma.hbm_to_vmem [thread:$0]  %s16, 256, %s18, [#allocation3], 128, 128, 8
    $region5: #{tpu_custom_call.1} parent=1 // pred_fallthru
      _
    // Predicated region
    $region6: #{tpu_custom_call.1} parent=1 // pred_check
      _
    $region7: #{tpu_custom_call.1} parent=1 // pred_check_branch
      %25 = sbr.rel (0) target = $region9
    $region8: #{tpu_custom_call.1} parent=1 // pred_region
      %27 = vsyncadd [#allocation6], 0
      %s29 = sshll.u32 %s1, 4
      %s30 = int_to_ptr.hbm [resolvable:$true] %s29
      %s31 = sshll.u32 [#allocation5], 4
      %s32 = int_to_ptr.vmem [resolvable:$true] %s31
      %34 = dma.hbm_to_vmem [thread:$0]  %s30, 16, %s32, [#allocation6]
    $region9: #{tpu_custom_call.1} parent=1 // pred_fallthru
      _
    // Predicated region
    $region10: #{tpu_custom_call.1} parent=1 // pred_check
      _
    $region11: #{tpu_custom_call.1} parent=1 // pred_check_branch
      %36 = sbr.rel (0) target = $region13
    $region12: #{tpu_custom_call.1} parent=1 // pred_region
      _
    $region13: #{tpu_custom_call.1} parent=1 // pred_fallthru
      _
    // Predicated region
    $region14: #{tpu_custom_call.1} parent=1 // pred_check
      _
    $region15: #{tpu_custom_call.1} parent=1 // pred_check_branch
      %38 = sbr.rel (0) target = $region17
    $region16: #{tpu_custom_call.1} parent=1 // pred_region
      %40 = dma.done [#allocation3], 256
    $region17: #{tpu_custom_call.1} parent=1 // pred_fallthru
      _
    // Predicated region
    $region18: #{tpu_custom_call.1} parent=1 // pred_check
      _
    $region19: #{tpu_custom_call.1} parent=1 // pred_check_branch
      %42 = sbr.rel (0) target = $region21
    $region20: #{tpu_custom_call.1} parent=1 // pred_region
      %44 = dma.done [#allocation6], 16
    $region21: #{tpu_custom_call.1} parent=1 // pred_fallthru
      _
    %v45 = vld [vmem:[#allocation2] sm:$0xff]
    %v46 = vld [vmem:[#allocation2 + $0x8] sm:$0xff]
    %v47 = vld [vmem:[#allocation5] sm:$0x1]
    %v48 = vld [vmem:[%s2] sm:$0x1]
    %vm49 = vcmask 261120
    %v50 = vsel %vm49, %v45, 0.0
    %51 = vadd.xlane.f32.xlu0 %v50
    %v52 = vpop.xlane.xlu0 %51
    %v53 = vsel %vm49, %v46, 0.0
    %54 = vadd.xlane.f32.xlu0 %v53
    %v55 = vpop.xlane.xlu0 %54
    %v56 = vrcp.pop 32.0
    %v57 = vmul.f32 32.0, %v56
    %v58 = vsub.f32 1.0, %v57
    %v59 = vmul.f32 %v56, %v58
    %v60 = vadd.f32 %v56, %v59
    %vm61 = vweird.f32 %v56
    %v62 = vsel %vm61, %v56, %v60
    %v63 = vmul.f32 %v52, %v62
    %v64 = vmul.f32 %v55, %v62
    %v65 = vsub.f32 %v45, %v63
    %v66 = vsub.f32 %v46, %v64
    %v67 = vmul.f32 %v65, %v65
    %v68 = vmul.f32 %v66, %v66
    %v69 = vsel %vm49, %v67, 0.0
    %70 = vadd.xlane.f32.xlu0 %v69
    %v71 = vpop.xlane.xlu0 %70
    %v72 = vsel %vm49, %v68, 0.0
    %73 = vadd.xlane.f32.xlu0 %v72
    %v74 = vpop.xlane.xlu0 %73
    %v75 = vmul.f32 %v71, %v62
    %v76 = vmul.f32 %v74, %v62
    %v77 = vadd.f32 %v75, 1e-12
    %v78 = vadd.f32 %v76, 1e-12
    %v79 = vrsqrt.pop %v77
    %v80 = vmul.f32 %v79, %v77
    %v81 = vmul.f32 %v80, %v79
    %v82 = vmul.f32 0.5, %v81
    %v83 = vsub.f32 1.5, %v82
    %v84 = vmul.f32 %v79, %v83
    %vm85 = vweird.f32 %v77
    %vm86 = vweird.f32 %v79
    %vm87 = vmor %vm85, %vm86
    %v88 = vsel %vm87, %v79, %v84
    %v89 = vrsqrt.pop %v78
    %v90 = vmul.f32 %v89, %v78
    %v91 = vmul.f32 %v90, %v89
    %v92 = vmul.f32 0.5, %v91
    %v93 = vsub.f32 1.5, %v92
    %v94 = vmul.f32 %v89, %v93
    %vm95 = vweird.f32 %v78
    %vm96 = vweird.f32 %v89
    %vm97 = vmor %vm95, %vm96
    %v98 = vsel %vm97, %v89, %v94
    %v99 = vmul.f32 %v65, %v88
    %v100 = vmul.f32 %v66, %v98
    %v102 = vperm.slane %v47, 0
    %v104 = vmul.f32 %v99, %v102
    %v105 = vmul.f32 %v100, %v102
    %v107 = vperm.slane %v48, 0
    %v109 = vadd.f32 %v104, %v107
    %v110 = vadd.f32 %v105, %v107
    %111 = vst.msk [vmem:[#allocation7] sm:$0xff] %vm49, %v109
    %112 = vst.msk [vmem:[#allocation7 + $0x8] sm:$0xff] %vm49, %v110
    // Predicated region
    $region22: #{tpu_custom_call.1} parent=1 // pred_check
      _
    $region23: #{tpu_custom_call.1} parent=1 // pred_check_branch
      %114 = sbr.rel (0) target = $region25
    $region24: #{tpu_custom_call.1} parent=1 // pred_region
      %116 = vsyncadd [#allocation4], 0
      %s117 = sshll.u32 [#allocation7], 4
      %s118 = int_to_ptr.vmem [resolvable:$true] %s117
      %s119 = sshll.u32 %s3, 4
      %s120 = int_to_ptr.hbm [resolvable:$true] %s119
      %125 = dma.vmem_to_hbm [thread:$0]  %s118, 256, %s120, [#allocation4], 128, 128, 8
    $region25: #{tpu_custom_call.1} parent=1 // pred_fallthru
      _
    // Predicated region
    $region26: #{tpu_custom_call.1} parent=1 // pred_check
      _
    $region27: #{tpu_custom_call.1} parent=1 // pred_check_branch
      %127 = sbr.rel (0) target = $region29
    $region28: #{tpu_custom_call.1} parent=1 // pred_region
      %129 = dma.done [#allocation4], 256
    $region29: #{tpu_custom_call.1} parent=1 // pred_fallthru
      _
    %130 = vsyncpa [#allocation3], 1
    %131 = vsyncpa [#allocation6], 1
    %132 = vsyncpa [#allocation4], 1

</llo_original>
